<compile_context>
chip_gen: v7x
topology: tpu7x:2x2x1
jax: 0.10.0
libtpu: 0.0.40
codegen_flags: <defaults>
</compile_context>

<pallas_src>
import jax
import jax.numpy as jnp
from jax.experimental import pallas as pl
from jax.experimental.pallas import tpu as pltpu


def _round_up(x, m):
    return (x + m - 1) // m * m


def _log_sigmoid(x):
    # Stable log(sigmoid(x)) = min(x, 0) - log(1 + exp(-|x|)).
    return jnp.minimum(x, 0.0) - jnp.log(1.0 + jnp.exp(-jnp.abs(x)))


def _projection_kl_kernel(alpha_ref, beta_ref, w0_ref, b0_ref, w1_ref, b1_ref,
                          out_first_ref, out_second_ref):
    na = alpha_ref.shape[0]

    # ---- layer0: one matmul over the stacked [alpha; beta] rows ----
    w0 = w0_ref[...]                                               # (V, H)
    x = jnp.concatenate([alpha_ref[...], beta_ref[...]], axis=0)   # (Na+Nb, V), in registers
    h = jnp.dot(x.astype(w0.dtype), w0,
                preferred_element_type=jnp.float32) + b0_ref[...]  # (Na+Nb, H)
    a_proj = h[:na, :]     # Y = alpha projections   (Na, H)
    b_proj = h[na:, :]     # X = beta projections    (Nb, H)

    # ---- _kl_calc(X, Y): kl[i] = X[i] + sum_j sig(Yj)*(log sig(Yj) - log sig(Xi)) ----
    sig_y = jax.nn.sigmoid(a_proj)
    log_sig_y = _log_sigmoid(a_proj)
    s_sum = jnp.sum(sig_y, axis=0, keepdims=True)                  # (1, H)
    t_sum = jnp.sum(sig_y * log_sig_y, axis=0, keepdims=True)      # (1, H)
    kl = b_proj + t_sum - s_sum * _log_sigmoid(b_proj)             # (Nb, H)

    # ---- layer1: one matmul over the stacked [kl; alpha_proj] rows (reference order) ----
    w1 = w1_ref[...]                                               # (H, Vp)
    l1_in = jnp.concatenate([kl, a_proj], axis=0)                  # (Nb+Na, H), in registers
    out = jnp.dot(l1_in.astype(w1.dtype), w1,
                  preferred_element_type=jnp.float32) + b1_ref[...]  # (Nb+Na, Vp)

    # Reproduce the PyTorch return slicing literally: (out[Na:], out[:Na]).
    # (For na != nb this mixes trailing kl rows with alpha rows, exactly like
    #  the reference module.)
    out_first_ref[...] = out[na:, :]
    out_second_ref[...] = out[:na, :]


def _mlp_kernel(beta_ref, w0_ref, b0_ref, w1_ref, b1_ref, out_ref):
    # Na == 0 branch: plain layer1(layer0(beta)).
    w0 = w0_ref[...]
    h = jnp.dot(beta_ref[...].astype(w0.dtype), w0,
                preferred_element_type=jnp.float32) + b0_ref[...]
    w1 = w1_ref[...]
    out_ref[...] = jnp.dot(h.astype(w1.dtype), w1,
                           preferred_element_type=jnp.float32) + b1_ref[...]


def init_params(key, vertex_dim, hid_dim):
    """Deterministic nn.Linear-style init (uniform +/- 1/sqrt(fan_in))."""
    k0, k1, k2, k3 = jax.random.split(key, 4)
    bound0 = 1.0 / (vertex_dim ** 0.5)
    bound1 = 1.0 / (hid_dim ** 0.5)
    return {
        "w0": jax.random.uniform(k0, (hid_dim, vertex_dim), jnp.float32, -bound0, bound0),
        "b0": jax.random.uniform(k1, (hid_dim,), jnp.float32, -bound0, bound0),
        "w1": jax.random.uniform(k2, (vertex_dim, hid_dim), jnp.float32, -bound1, bound1),
        "b1": jax.random.uniform(k3, (vertex_dim,), jnp.float32, -bound1, bound1),
    }


def prepare_params(params, compute_dtype=jnp.float32):
    """One-time prep: transpose weights to (in, out); lane-pad ONLY the layer1
    output dim to 128.  compute_dtype=jnp.bfloat16 is an option on v6e/v7x
    (validate with looser tolerance)."""
    hid_dim, vertex_dim = params["w0"].shape
    vp = _round_up(vertex_dim, 128)
    w0p = params["w0"].T.astype(compute_dtype)                          # (V, H)
    b0p = params["b0"].reshape(1, hid_dim).astype(jnp.float32)          # (1, H)
    w1p = (jnp.zeros((hid_dim, vp), compute_dtype)
           .at[:, :vertex_dim].set(params["w1"].T.astype(compute_dtype)))  # (H, Vp)
    b1p = jnp.zeros((1, vp), jnp.float32).at[0, :vertex_dim].set(params["b1"])
    return {"w0p": w0p, "b0p": b0p, "w1p": w1p, "b1p": b1p,
            "v": vertex_dim, "vp": vp, "h": hid_dim}


def projection_kl_forward(prepped, alpha, beta):
    """Returns lane-padded outputs of width prepped['vp']; columns [v:vp] are
    exactly zero.  Slice [:, :v] only at the final consumer."""
    vp = prepped["vp"]
    na, nb = alpha.shape[0], beta.shape[0]
    vmem = pl.BlockSpec(memory_space=pltpu.MemorySpace.VMEM)
    weights = (prepped["w0p"], prepped["b0p"], prepped["w1p"], prepped["b1p"])

    if na == 0:
        return pl.pallas_call(
            _mlp_kernel,
            out_shape=jax.ShapeDtypeStruct((nb, vp), jnp.float32),
            in_specs=[vmem] * 5,
            out_specs=vmem,
        )(beta, *weights)

    out_first, out_second = pl.pallas_call(
        _projection_kl_kernel,
        out_shape=(jax.ShapeDtypeStruct((nb, vp), jnp.float32),
                   jax.ShapeDtypeStruct((na, vp), jnp.float32)),
        in_specs=[vmem] * 6,
        out_specs=[vmem, vmem],
    )(alpha, beta, *weights)
    return out_first, out_second


def _reference(params, alpha, beta):
    """Pure-JAX mirror of the PyTorch module for verification."""
    def lin(x, w, b):
        return x @ w.T + b
    na = alpha.shape[0]
    if na == 0:
        return lin(lin(beta, params["w0"], params["b0"]), params["w1"], params["b1"])
    h = lin(jnp.concatenate([alpha, beta], 0), params["w0"], params["b0"])
    y_rows, x_rows = h[:na, :], h[na:, :]
    sig_y = jax.nn.sigmoid(y_rows)
    kl = (x_rows
          + jnp.sum(sig_y * jnp.log(sig_y), 0, keepdims=True)
          - jnp.sum(sig_y, 0, keepdims=True) * jnp.log(jax.nn.sigmoid(x_rows)))
    out = lin(jnp.concatenate([kl, y_rows], 0), params["w1"], params["b1"])
    return out[na:, :], out[:na, :]


if __name__ == "__main__":
    vertex_dim, hid_dim = 16, 32
    na, nb = 8, 8

    key = jax.random.PRNGKey(0)
    kp, ka, kb = jax.random.split(key, 3)
    params = init_params(kp, vertex_dim, hid_dim)
    prepped = prepare_params(params)          # one-time: transpose + output lane-pad
    alpha = jax.random.normal(ka, (na, vertex_dim), jnp.float32)
    beta = jax.random.normal(kb, (nb, vertex_dim), jnp.float32)
    v = vertex_dim

    # Main branch (Na > 0).  Kernel returns lane-padded (., 128) outputs.
    out_first_p, out_second_p = projection_kl_forward(prepped, alpha, beta)
    jax.block_until_ready((out_first_p, out_second_p))
    ref_first, ref_second = _reference(params, alpha, beta)
    assert jnp.allclose(out_first_p[:, :v], ref_first, atol=1e-4, rtol=1e-4)
    assert jnp.allclose(out_second_p[:, :v], ref_second, atol=1e-4, rtol=1e-4)

    # Na == 0 branch.
    empty_alpha = jnp.zeros((0, vertex_dim), jnp.float32)
    out_mlp_p = projection_kl_forward(prepped, empty_alpha, beta)
    jax.block_until_ready(out_mlp_p)
    ref_mlp = _reference(params, empty_alpha, beta)
    assert jnp.allclose(out_mlp_p[:, :v], ref_mlp, atol=1e-4, rtol=1e-4)

    print("KERNEL_OK")
</pallas_src>

<mosaic_0001>
module attributes {stable_mosaic.version = 11 : i64} {
  func.func @_projection_kl_kernel(%arg0: memref<8x16xf32, #tpu.memory_space<vmem>>, %arg1: memref<8x16xf32, #tpu.memory_space<vmem>>, %arg2: memref<16x32xf32, #tpu.memory_space<vmem>>, %arg3: memref<1x32xf32, #tpu.memory_space<vmem>>, %arg4: memref<32x128xf32, #tpu.memory_space<vmem>>, %arg5: memref<1x128xf32, #tpu.memory_space<vmem>>, %arg6: memref<8x128xf32, #tpu.memory_space<vmem>>, %arg7: memref<8x128xf32, #tpu.memory_space<vmem>>) attributes {dimension_semantics = [], scalar_prefetch = 0 : i64, scratch_operands = 0 : i64, tpu.core_type = #tpu.core_type<tc>} {
    %c0 = arith.constant 0 : index
    %c0_0 = arith.constant 0 : index
    %0 = vector.load %arg2[%c0, %c0_0] : memref<16x32xf32, #tpu.memory_space<vmem>>, vector<16x32xf32>
    %c0_1 = arith.constant 0 : index
    %c0_2 = arith.constant 0 : index
    %1 = vector.load %arg0[%c0_1, %c0_2] : memref<8x16xf32, #tpu.memory_space<vmem>>, vector<8x16xf32>
    %c0_3 = arith.constant 0 : index
    %c0_4 = arith.constant 0 : index
    %2 = vector.load %arg1[%c0_3, %c0_4] : memref<8x16xf32, #tpu.memory_space<vmem>>, vector<8x16xf32>
    %3 = tpu.concatenate %1, %2 in 0 : vector<8x16xf32>, vector<8x16xf32> -> vector<16x16xf32>
    %cst = arith.constant dense<0.000000e+00> : vector<16x32xf32>
    %4 = tpu.matmul %3, %0, %cst {dimension_numbers = #tpu.dot_dimension_numbers<[1], [0], [0], [1], [0, 0, 1, 1], [], []>} : vector<16x16xf32>, vector<16x32xf32>, vector<16x32xf32> -> vector<16x32xf32>
    %c0_5 = arith.constant 0 : index
    %c0_6 = arith.constant 0 : index
    %5 = vector.load %arg3[%c0_5, %c0_6] : memref<1x32xf32, #tpu.memory_space<vmem>>, vector<1x32xf32>
    %6 = vector.broadcast %5 : vector<1x32xf32> to vector<16x32xf32>
    %7 = arith.addf %4, %6 : vector<16x32xf32>
    %8 = vector.extract_strided_slice %7 {offsets = [0, 0], sizes = [8, 32], strides = [1, 1]} : vector<16x32xf32> to vector<8x32xf32>
    %9 = vector.extract_strided_slice %7 {offsets = [8, 0], sizes = [8, 32], strides = [1, 1]} : vector<16x32xf32> to vector<8x32xf32>
    %10 = arith.negf %8 : vector<8x32xf32>
    %11 = math.exp %10 : vector<8x32xf32>
    %cst_7 = arith.constant 1.000000e+00 : f32
    %12 = vector.broadcast %cst_7 : f32 to vector<8x32xf32>
    %13 = arith.addf %12, %11 : vector<8x32xf32>
    %14 = arith.divf %12, %13 : vector<8x32xf32>
    %cst_8 = arith.constant 0.000000e+00 : f32
    %15 = vector.broadcast %cst_8 : f32 to vector<8x32xf32>
    %16 = arith.minimumf %8, %15 : vector<8x32xf32>
    %17 = math.absf %8 : vector<8x32xf32>
    %cst_9 = arith.constant 0.000000e+00 : f32
    %18 = vector.broadcast %cst_9 : f32 to vector<8x32xf32>
    %19 = arith.subf %18, %17 : vector<8x32xf32>
    %20 = math.exp %19 : vector<8x32xf32>
    %cst_10 = arith.constant 1.000000e+00 : f32
    %21 = vector.broadcast %cst_10 : f32 to vector<8x32xf32>
    %22 = arith.addf %21, %20 : vector<8x32xf32>
    %23 = math.log %22 : vector<8x32xf32>
    %24 = arith.subf %16, %23 : vector<8x32xf32>
    %cst_11 = arith.constant dense<0.000000e+00> : vector<32xf32>
    %25 = vector.multi_reduction <add>, %14, %cst_11 [0] : vector<8x32xf32> to vector<32xf32>
    %26 = vector.shape_cast %25 : vector<32xf32> to vector<1x32xf32>
    %27 = arith.mulf %14, %24 : vector<8x32xf32>
    %cst_12 = arith.constant dense<0.000000e+00> : vector<32xf32>
    %28 = vector.multi_reduction <add>, %27, %cst_12 [0] : vector<8x32xf32> to vector<32xf32>
    %29 = vector.shape_cast %28 : vector<32xf32> to vector<1x32xf32>
    %30 = vector.broadcast %29 : vector<1x32xf32> to vector<8x32xf32>
    %31 = arith.addf %9, %30 : vector<8x32xf32>
    %cst_13 = arith.constant 0.000000e+00 : f32
    %32 = vector.broadcast %cst_13 : f32 to vector<8x32xf32>
    %33 = arith.minimumf %9, %32 : vector<8x32xf32>
    %34 = math.absf %9 : vector<8x32xf32>
    %cst_14 = arith.constant 0.000000e+00 : f32
    %35 = vector.broadcast %cst_14 : f32 to vector<8x32xf32>
    %36 = arith.subf %35, %34 : vector<8x32xf32>
    %37 = math.exp %36 : vector<8x32xf32>
    %cst_15 = arith.constant 1.000000e+00 : f32
    %38 = vector.broadcast %cst_15 : f32 to vector<8x32xf32>
    %39 = arith.addf %38, %37 : vector<8x32xf32>
    %40 = math.log %39 : vector<8x32xf32>
    %41 = arith.subf %33, %40 : vector<8x32xf32>
    %42 = vector.broadcast %26 : vector<1x32xf32> to vector<8x32xf32>
    %43 = arith.mulf %42, %41 : vector<8x32xf32>
    %44 = arith.subf %31, %43 : vector<8x32xf32>
    %c0_16 = arith.constant 0 : index
    %c0_17 = arith.constant 0 : index
    %45 = vector.load %arg4[%c0_16, %c0_17] : memref<32x128xf32, #tpu.memory_space<vmem>>, vector<32x128xf32>
    %46 = tpu.concatenate %44, %8 in 0 : vector<8x32xf32>, vector<8x32xf32> -> vector<16x32xf32>
    %cst_18 = arith.constant dense<0.000000e+00> : vector<16x128xf32>
    %47 = tpu.matmul %46, %45, %cst_18 {dimension_numbers = #tpu.dot_dimension_numbers<[1], [0], [0], [1], [0, 0, 1, 1], [], []>} : vector<16x32xf32>, vector<32x128xf32>, vector<16x128xf32> -> vector<16x128xf32>
    %c0_19 = arith.constant 0 : index
    %c0_20 = arith.constant 0 : index
    %48 = vector.load %arg5[%c0_19, %c0_20] : memref<1x128xf32, #tpu.memory_space<vmem>>, vector<1x128xf32>
    %49 = vector.broadcast %48 : vector<1x128xf32> to vector<16x128xf32>
    %50 = arith.addf %47, %49 : vector<16x128xf32>
    %51 = vector.extract_strided_slice %50 {offsets = [8, 0], sizes = [8, 128], strides = [1, 1]} : vector<16x128xf32> to vector<8x128xf32>
    %c0_21 = arith.constant 0 : index
    %c0_22 = arith.constant 0 : index
    %52 = vector.load %arg6[%c0_21, %c0_22] : memref<8x128xf32, #tpu.memory_space<vmem>>, vector<8x128xf32>
    tpu.vector_store %arg6[%c0_21, %c0_22], %51 {strides = array<i32>} : memref<8x128xf32, #tpu.memory_space<vmem>>, vector<8x128xf32>,
    %53 = vector.extract_strided_slice %50 {offsets = [0, 0], sizes = [8, 128], strides = [1, 1]} : vector<16x128xf32> to vector<8x128xf32>
    %c0_23 = arith.constant 0 : index
    %c0_24 = arith.constant 0 : index
    %54 = vector.load %arg7[%c0_23, %c0_24] : memref<8x128xf32, #tpu.memory_space<vmem>>, vector<8x128xf32>
    tpu.vector_store %arg7[%c0_23, %c0_24], %53 {strides = array<i32>} : memref<8x128xf32, #tpu.memory_space<vmem>>, vector<8x128xf32>,
    return
  }
}

</mosaic_0001>

<llo_original>
// kernel: tpu_custom_call.1
$region0: #{tpu_custom_call.1}
  #allocation0 [shape = 'u32[]', space=smem, size = 0x4, offset = 0x4, fixed_abs, tag = 'smem constant byte address 0x4 - core index']
  #allocation1 [shape = 'u32[144,128]{1,0:T(1,128)}', space=vmem, size = 0x12000, scoped, tag = 'internal scratch']
  %s0 = inlined_call_operand.hbm [shape: f32[8,16], index: 0, kind: input, shape index: {}]
  %s1 = inlined_call_operand.hbm [shape: f32[8,16], index: 1, kind: input, shape index: {}]
  %s2 = inlined_call_operand.hbm [shape: f32[16,32], index: 2, kind: input, shape index: {}]
  %s3 = inlined_call_operand.vmem [shape: f32[1,32], index: 3, kind: input, shape index: {}]
  %s4 = inlined_call_operand.hbm [shape: f32[32,128], index: 4, kind: input, shape index: {}]
  %s5 = inlined_call_operand.vmem [shape: f32[1,128], index: 5, kind: input, shape index: {}]
  %s6 = inlined_call_operand.hbm [shape: f32[8,128], index: 6, kind: output, shape index: {0}]
  %s7 = inlined_call_operand.hbm [shape: f32[8,128], index: 7, kind: output, shape index: {1}]
  %8 = xla_tuple %s6, %s7
  %s9 = sld [smem:[#allocation0]]
  $region58: #{tpu_custom_call.1} parent=0
    _
  %s11 = ssub.s32 1, %s9
  %s12 = scalar_select 0, %s11, %s9
  $region1: #{tpu_custom_call.1} parent=0
    #allocation2 [shape = 'u8[4096]{0}', space=vmem, size = 0x1000, scoped, tag = 'input window, operand 0, single buffered']
    #allocation3 [shape = 's32[1]{0}', space=sflag, size = 0x4, scoped, tag = 'scoped memory for tpu_custom_call.1']
    #allocation4 [shape = 's32[1]{0}', space=sflag, size = 0x4, scoped, tag = 'scoped memory for tpu_custom_call.1']
    #allocation5 [shape = 'u8[4096]{0}', space=vmem, size = 0x1000, scoped, tag = 'input window, operand 1, single buffered']
    #allocation6 [shape = 's32[1]{0}', space=sflag, size = 0x4, scoped, tag = 'scoped memory for tpu_custom_call.1']
    #allocation7 [shape = 'u8[8192]{0}', space=vmem, size = 0x2000, scoped, tag = 'input window, operand 2, single buffered']
    #allocation8 [shape = 'u8[16384]{0}', space=vmem, size = 0x4000, scoped, tag = 'input window, operand 4, single buffered']
    #allocation9 [shape = 's32[1]{0}', space=sflag, size = 0x4, scoped, tag = 'scoped memory for tpu_custom_call.1']
    #allocation10 [shape = 'u8[4096]{0}', space=vmem, size = 0x1000, scoped, tag = 'output window, operand 0, single buffered']
    #allocation11 [shape = 'u8[4096]{0}', space=vmem, size = 0x1000, scoped, tag = 'output window, operand 1, single buffered']
    #allocation12 [shape = 's32[1]{0}', space=sflag, size = 0x4, scoped, tag = 'scoped memory for tpu_custom_call.1']
    %13 = vsyncpa [#allocation3], 0
    %14 = vsyncpa [#allocation6], 0
    %15 = vsyncpa [#allocation9], 0
    %16 = vsyncpa [#allocation4], 0
    %17 = vsyncpa [#allocation12], 0
    // Predicated region
    $region2: #{tpu_custom_call.1} parent=1 // pred_check
      _
    $region3: #{tpu_custom_call.1} parent=1 // pred_check_branch
      %19 = sbr.rel (0) target = $region5
    $region4: #{tpu_custom_call.1} parent=1 // pred_region
      %s21 = ssub.s32 128, 128
      %22 = vsyncadd [#allocation3], %s21
      %s24 = sshll.u32 [#allocation2], 4
      %s25 = int_to_ptr.vmem [resolvable:$true] %s24
      %27 = dma.hbm_to_vmem [thread:$0]  %s0, 128, %s25, [#allocation3]
    $region5: #{tpu_custom_call.1} parent=1 // pred_fallthru
      _
    // Predicated region
    $region6: #{tpu_custom_call.1} parent=1 // pred_check
      _
    $region7: #{tpu_custom_call.1} parent=1 // pred_check_branch
      %29 = sbr.rel (0) target = $region9
    $region8: #{tpu_custom_call.1} parent=1 // pred_region
      %s31 = ssub.s32 128, 128
      %32 = vsyncadd [#allocation6], %s31
      %s34 = sshll.u32 [#allocation5], 4
      %s35 = int_to_ptr.vmem [resolvable:$true] %s34
      %37 = dma.hbm_to_vmem [thread:$0]  %s1, 128, %s35, [#allocation6]
    $region9: #{tpu_custom_call.1} parent=1 // pred_fallthru
      _
    // Predicated region
    $region10: #{tpu_custom_call.1} parent=1 // pred_check
      _
    $region11: #{tpu_custom_call.1} parent=1 // pred_check_branch
      %39 = sbr.rel (0) target = $region13
    $region12: #{tpu_custom_call.1} parent=1 // pred_region
      %s41 = ssub.s32 256, 256
      %42 = vsyncadd [#allocation6], %s41
      %s43 = sshll.u32 [#allocation7], 4
      %s44 = int_to_ptr.vmem [resolvable:$true] %s43
      %49 = dma.hbm_to_vmem [thread:$0]  %s2, 256, %s44, [#allocation6], 128, 128, 8
    $region13: #{tpu_custom_call.1} parent=1 // pred_fallthru
      _
    // Predicated region
    $region14: #{tpu_custom_call.1} parent=1 // pred_check
      _
    $region15: #{tpu_custom_call.1} parent=1 // pred_check_branch
      %51 = sbr.rel (0) target = $region17
    $region16: #{tpu_custom_call.1} parent=1 // pred_region
      _
    $region17: #{tpu_custom_call.1} parent=1 // pred_fallthru
      _
    // Predicated region
    $region18: #{tpu_custom_call.1} parent=1 // pred_check
      _
    $region19: #{tpu_custom_call.1} parent=1 // pred_check_branch
      %53 = sbr.rel (0) target = $region21
    $region20: #{tpu_custom_call.1} parent=1 // pred_region
      %s55 = ssub.s32 512, 512
      %56 = vsyncadd [#allocation9], %s55
      %s57 = sshll.u32 [#allocation8], 4
      %s58 = int_to_ptr.vmem [resolvable:$true] %s57
      %63 = dma.hbm_to_vmem [thread:$0]  %s4, 512, %s58, [#allocation9], 128, 128, 8
    $region21: #{tpu_custom_call.1} parent=1 // pred_fallthru
      _
    // Predicated region
    $region22: #{tpu_custom_call.1} parent=1 // pred_check
      _
    $region23: #{tpu_custom_call.1} parent=1 // pred_check_branch
      %65 = sbr.rel (0) target = $region25
    $region24: #{tpu_custom_call.1} parent=1 // pred_region
      _
    $region25: #{tpu_custom_call.1} parent=1 // pred_fallthru
      _
    // Predicated region
    $region26: #{tpu_custom_call.1} parent=1 // pred_check
      _
    $region27: #{tpu_custom_call.1} parent=1 // pred_check_branch
      %67 = sbr.rel (0) target = $region29
    $region28: #{tpu_custom_call.1} parent=1 // pred_region
      %68 = dma.done [#allocation3], 128
    $region29: #{tpu_custom_call.1} parent=1 // pred_fallthru
      _
    // Predicated region
    $region30: #{tpu_custom_call.1} parent=1 // pred_check
      _
    $region31: #{tpu_custom_call.1} parent=1 // pred_check_branch
      %70 = sbr.rel (0) target = $region33
    $region32: #{tpu_custom_call.1} parent=1 // pred_region
      %71 = dma.done [#allocation6], 128
    $region33: #{tpu_custom_call.1} parent=1 // pred_fallthru
      _
    // Predicated region
    $region34: #{tpu_custom_call.1} parent=1 // pred_check
      _
    $region35: #{tpu_custom_call.1} parent=1 // pred_check_branch
      %73 = sbr.rel (0) target = $region37
    $region36: #{tpu_custom_call.1} parent=1 // pred_region
      %74 = dma.done [#allocation6], 256
    $region37: #{tpu_custom_call.1} parent=1 // pred_fallthru
      _
    // Predicated region
    $region38: #{tpu_custom_call.1} parent=1 // pred_check
      _
    $region39: #{tpu_custom_call.1} parent=1 // pred_check_branch
      %76 = sbr.rel (0) target = $region41
    $region40: #{tpu_custom_call.1} parent=1 // pred_region
      %77 = dma.done [#allocation9], 512
    $region41: #{tpu_custom_call.1} parent=1 // pred_fallthru
      _
    %v78 = vld [vmem:[#allocation7] sm:$0xff]
    %v79 = vld [vmem:[#allocation7 + $0x8] sm:$0xff]
    %v80 = vld [vmem:[#allocation2] sm:$0xff]
    %v81 = vld [vmem:[#allocation5] sm:$0xff]
    %v82 = vld [vmem:[%s3] sm:$0x1]
    %v84 = vlaneseq
    %v85 = vshrl.u32 %v84, 7
    %v86 = vsub.s32 0, %v85
    %v87 = vrot.slane %v82, %v86
    %vm89 = vcmask 130048
    %v91 = vsel %vm89, %v80, 0
    %v94 = vsel %vm89, %v81, 0
    %96 = vmatprep.subr.mxu0 0.0
    %97 = vmatpush1.msra.mxu0 %v78
    %98 = vmatprep.subr.mxu0 0.0
    %99 = vmatpush1.msra.mxu0 %v79
    %100 = vmatprep.subr.mxu0 0.0
    %101 = vmatpush1.msra.mxu0 0.0
    %102 = vmatprep.subr.mxu0 0.0
    %103 = vmatpush1.msra.mxu0 0.0
    %104 = vmatprep.subr.mxu0 0.0
    %105 = vmatpush1.msra.mxu0 0.0
    %106 = vmatprep.subr.mxu0 0.0
    %107 = vmatpush1.msra.mxu0 0.0
    %108 = vmatprep.subr.mxu0 0.0
    %109 = vmatpush1.msra.mxu0 0.0
    %110 = vmatprep.subr.mxu0 0.0
    %111 = vmatpush1.msra.mxu0 0.0
    %112 = vmatprep.subr.mxu0 0.0
    %113 = vmatpush1.msra.mxu0 0.0
    %114 = vmatprep.subr.mxu0 0.0
    %115 = vmatpush1.msra.mxu0 0.0
    %116 = vmatprep.subr.mxu0 0.0
    %117 = vmatpush1.msra.mxu0 0.0
    %118 = vmatprep.subr.mxu0 0.0
    %119 = vmatpush1.msra.mxu0 0.0
    %120 = vmatprep.subr.mxu0 0.0
    %121 = vmatpush1.msra.mxu0 0.0
    %122 = vmatprep.subr.mxu0 0.0
    %123 = vmatpush1.msra.mxu0 0.0
    %124 = vmatprep.subr.mxu0 0.0
    %125 = vmatpush1.msra.mxu0 0.0
    %126 = vmatprep.subr.mxu0 0.0
    %127 = vmatpush1.msra.mxu0 0.0
    %128 = vmatprep.subr.mxu0 0.0
    %129 = vmatpush1.msra.mxu0 0.0
    %130 = vmatprep.subr.mxu0 0.0
    %131 = vmatpush1.msra.mxu0 0.0
    %132 = vmatprep.subr.mxu0 0.0
    %133 = vmatpush1.msra.mxu0 0.0
    %134 = vmatprep.subr.mxu0 0.0
    %135 = vmatpush1.msra.mxu0 0.0
    %136 = vmatprep.subr.mxu0 0.0
    %137 = vmatpush1.msra.mxu0 0.0
    %138 = vmatprep.subr.mxu0 0.0
    %139 = vmatpush1.msra.mxu0 0.0
    %140 = vmatprep.subr.mxu0 0.0
    %141 = vmatpush1.msra.mxu0 0.0
    %142 = vmatprep.subr.mxu0 0.0
    %143 = vmatpush1.msra.mxu0 0.0
    %144 = vmatprep.subr.mxu0 0.0
    %145 = vmatpush1.msra.mxu0 0.0
    %146 = vmatprep.subr.mxu0 0.0
    %147 = vmatpush1.msra.mxu0 0.0
    %148 = vmatprep.subr.mxu0 0.0
    %149 = vmatpush1.msra.mxu0 0.0
    %150 = vmatprep.subr.mxu0 0.0
    %151 = vmatpush1.msra.mxu0 0.0
    %152 = vmatprep.subr.mxu0 0.0
    %153 = vmatpush1.msra.mxu0 0.0
    %154 = vmatprep.subr.mxu0 0.0
    %155 = vmatpush1.msra.mxu0 0.0
    %156 = vmatprep.subr.mxu0 0.0
    %157 = vmatpush1.msra.mxu0 0.0
    %158 = vmatprep.subr.mxu0 0.0
    %159 = vmatpush1.msra.mxu0 0.0
    %160 = vmatprep.mubr.f32.mxu0 0.0
    %161 = vmatmul.mubr.f32.gmra.mrb[0].mxu0 %v91
    %v162 = vpop.f32.mrb[0].mxu0
    %v163 = vadd.f32 %v87, %v162
    %v164 = vpop.f32.mrb[0].mxu0
    %165 = vmatprep.mubr.f32.mxu0 0.0
    %166 = vmatmul.mubr.f32.gmra.mrb[0].mxu0 %v94
    %v167 = vpop.f32.mrb[0].mxu0
    %v168 = vadd.f32 %v87, %v167
    %v169 = vpop.f32.mrb[0].mxu0
    %170 = vdwg.mxu0
    %v171 = vxor.u32 %v163, 2147483648
    %v172 = vmul.f32 %v171, 1.442695
    %v173 = vpow.pop %v172
    %v174 = vadd.f32 %v173, 1.0
    %v175 = vrcp.pop %v174
    %v176 = vmul.f32 1.0, %v175
    %v177 = vmin.f32 %v163, 0.0
    %v178 = vand.u32 2147483647, %v163
    %v179 = vsub.f32 0.0, %v178
    %v180 = vmul.f32 %v179, 1.442695
    %v181 = vpow.pop %v180
    %v182 = vadd.f32 %v181, 1.0
    %v183 = vlog2.pop %v182
    %v184 = vmul.f32 %v183, 0.6931472
    %v185 = vsub.f32 %v177, %v184
    %vm186 = vcmask 261120
    %v187 = vsel %vm186, %v176, 0.0
    %v188 = vrot.slane %v187, 4
    %v189 = vadd.f32 %v187, %v188
    %v190 = vrot.slane %v189, 2
    %v191 = vadd.f32 %v189, %v190
    %v192 = vrot.slane %v191, 1
    %v193 = vadd.f32 %v191, %v192
    %v194 = vmul.f32 %v176, %v185
    %v195 = vsel %vm186, %v194, 0.0
    %v196 = vrot.slane %v195, 4
    %v197 = vadd.f32 %v195, %v196
    %v198 = vrot.slane %v197, 2
    %v199 = vadd.f32 %v197, %v198
    %v200 = vrot.slane %v199, 1
    %v201 = vadd.f32 %v199, %v200
    %v202 = vadd.f32 %v168, %v201
    %v203 = vmin.f32 %v168, 0.0
    %v204 = vand.u32 2147483647, %v168
    %v205 = vsub.f32 0.0, %v204
    %v206 = vmul.f32 %v205, 1.442695
    %v207 = vpow.pop %v206
    %v208 = vadd.f32 %v207, 1.0
    %v209 = vlog2.pop %v208
    %v210 = vmul.f32 %v209, 0.6931472
    %v211 = vsub.f32 %v203, %v210
    %v212 = vmul.f32 %v193, %v211
    %v213 = vsub.f32 %v202, %v212
    %v214 = vld [vmem:[#allocation8] sm:$0xff]
    %v215 = vld [vmem:[#allocation8 + $0x8] sm:$0xff]
    %v216 = vld [vmem:[#allocation8 + $0x10] sm:$0xff]
    %v217 = vld [vmem:[#allocation8 + $0x18] sm:$0xff]
    %v218 = vld [vmem:[%s5] sm:$0x1]
    %v220 = vlaneseq
    %v221 = vshrl.u32 %v220, 7
    %v222 = vsub.s32 0, %v221
    %v223 = vrot.slane %v218, %v222
    %v226 = vsel %vm186, %v213, 0
    %v229 = vsel %vm186, %v163, 0
    %231 = vmatprep.subr.mxu0 0.0
    %232 = vmatpush1.msra.mxu0 %v214
    %233 = vmatprep.subr.mxu0 0.0
    %234 = vmatpush1.msra.mxu0 %v215
    %235 = vmatprep.subr.mxu0 0.0
    %236 = vmatpush1.msra.mxu0 %v216
    %237 = vmatprep.subr.mxu0 0.0
    %238 = vmatpush1.msra.mxu0 %v217
    %239 = vmatprep.subr.mxu0 0.0
    %240 = vmatpush1.msra.mxu0 0.0
    %241 = vmatprep.subr.mxu0 0.0
    %242 = vmatpush1.msra.mxu0 0.0
    %243 = vmatprep.subr.mxu0 0.0
    %244 = vmatpush1.msra.mxu0 0.0
    %245 = vmatprep.subr.mxu0 0.0
    %246 = vmatpush1.msra.mxu0 0.0
    %247 = vmatprep.subr.mxu0 0.0
    %248 = vmatpush1.msra.mxu0 0.0
    %249 = vmatprep.subr.mxu0 0.0
    %250 = vmatpush1.msra.mxu0 0.0
    %251 = vmatprep.subr.mxu0 0.0
    %252 = vmatpush1.msra.mxu0 0.0
    %253 = vmatprep.subr.mxu0 0.0
    %254 = vmatpush1.msra.mxu0 0.0
    %255 = vmatprep.subr.mxu0 0.0
    %256 = vmatpush1.msra.mxu0 0.0
    %257 = vmatprep.subr.mxu0 0.0
    %258 = vmatpush1.msra.mxu0 0.0
    %259 = vmatprep.subr.mxu0 0.0
    %260 = vmatpush1.msra.mxu0 0.0
    %261 = vmatprep.subr.mxu0 0.0
    %262 = vmatpush1.msra.mxu0 0.0
    %263 = vmatprep.subr.mxu0 0.0
    %264 = vmatpush1.msra.mxu0 0.0
    %265 = vmatprep.subr.mxu0 0.0
    %266 = vmatpush1.msra.mxu0 0.0
    %267 = vmatprep.subr.mxu0 0.0
    %268 = vmatpush1.msra.mxu0 0.0
    %269 = vmatprep.subr.mxu0 0.0
    %270 = vmatpush1.msra.mxu0 0.0
    %271 = vmatprep.subr.mxu0 0.0
    %272 = vmatpush1.msra.mxu0 0.0
    %273 = vmatprep.subr.mxu0 0.0
    %274 = vmatpush1.msra.mxu0 0.0
    %275 = vmatprep.subr.mxu0 0.0
    %276 = vmatpush1.msra.mxu0 0.0
    %277 = vmatprep.subr.mxu0 0.0
    %278 = vmatpush1.msra.mxu0 0.0
    %279 = vmatprep.subr.mxu0 0.0
    %280 = vmatpush1.msra.mxu0 0.0
    %281 = vmatprep.subr.mxu0 0.0
    %282 = vmatpush1.msra.mxu0 0.0
    %283 = vmatprep.subr.mxu0 0.0
    %284 = vmatpush1.msra.mxu0 0.0
    %285 = vmatprep.subr.mxu0 0.0
    %286 = vmatpush1.msra.mxu0 0.0
    %287 = vmatprep.subr.mxu0 0.0
    %288 = vmatpush1.msra.mxu0 0.0
    %289 = vmatprep.subr.mxu0 0.0
    %290 = vmatpush1.msra.mxu0 0.0
    %291 = vmatprep.subr.mxu0 0.0
    %292 = vmatpush1.msra.mxu0 0.0
    %293 = vmatprep.subr.mxu0 0.0
    %294 = vmatpush1.msra.mxu0 0.0
    %295 = vmatprep.mubr.f32.mxu0 0.0
    %296 = vmatmul.mubr.f32.gmra.mrb[0].mxu0 %v226
    %v297 = vpop.f32.mrb[0].mxu0
    %v298 = vadd.f32 %v223, %v297
    %v299 = vpop.f32.mrb[0].mxu0
    %300 = vmatprep.mubr.f32.mxu0 0.0
    %301 = vmatmul.mubr.f32.gmra.mrb[0].mxu0 %v229
    %v302 = vpop.f32.mrb[0].mxu0
    %v303 = vadd.f32 %v223, %v302
    %v304 = vpop.f32.mrb[0].mxu0
    %305 = vdwg.mxu0
    %306 = vst [vmem:[#allocation10] sm:$0xff] %v303
    %307 = vst [vmem:[#allocation11] sm:$0xff] %v298
    // Predicated region
    $region42: #{tpu_custom_call.1} parent=1 // pred_check
      _
    $region43: #{tpu_custom_call.1} parent=1 // pred_check_branch
      %309 = sbr.rel (0) target = $region45
    $region44: #{tpu_custom_call.1} parent=1 // pred_region
      %s311 = ssub.s32 128, 128
      %312 = vsyncadd [#allocation4], %s311
      %s314 = sshll.u32 [#allocation10], 4
      %s315 = int_to_ptr.vmem [resolvable:$true] %s314
      %317 = dma.vmem_to_hbm [thread:$0]  %s315, 128, %s6, [#allocation4]
    $region45: #{tpu_custom_call.1} parent=1 // pred_fallthru
      _
    // Predicated region
    $region46: #{tpu_custom_call.1} parent=1 // pred_check
      _
    $region47: #{tpu_custom_call.1} parent=1 // pred_check_branch
      %319 = sbr.rel (0) target = $region49
    $region48: #{tpu_custom_call.1} parent=1 // pred_region
      %s321 = ssub.s32 128, 128
      %322 = vsyncadd [#allocation12], %s321
      %s324 = sshll.u32 [#allocation11], 4
      %s325 = int_to_ptr.vmem [resolvable:$true] %s324
      %327 = dma.vmem_to_hbm [thread:$0]  %s325, 128, %s7, [#allocation12]
    $region49: #{tpu_custom_call.1} parent=1 // pred_fallthru
      _
    // Predicated region
    $region50: #{tpu_custom_call.1} parent=1 // pred_check
      _
    $region51: #{tpu_custom_call.1} parent=1 // pred_check_branch
      %329 = sbr.rel (0) target = $region53
    $region52: #{tpu_custom_call.1} parent=1 // pred_region
      %330 = dma.done [#allocation4], 128
    $region53: #{tpu_custom_call.1} parent=1 // pred_fallthru
      _
    // Predicated region
    $region54: #{tpu_custom_call.1} parent=1 // pred_check
      _
    $region55: #{tpu_custom_call.1} parent=1 // pred_check_branch
      %332 = sbr.rel (0) target = $region57
    $region56: #{tpu_custom_call.1} parent=1 // pred_region
      %333 = dma.done [#allocation12], 128
    $region57: #{tpu_custom_call.1} parent=1 // pred_fallthru
      _
    %334 = vsyncpa [#allocation3], 1
    %335 = vsyncpa [#allocation6], 1
    %336 = vsyncpa [#allocation9], 1
    %337 = vsyncpa [#allocation4], 1
    %338 = vsyncpa [#allocation12], 1

</llo_original>
